<compile_context>
chip_gen: v7x
topology: tpu7x:2x2x1
jax: 0.10.0
libtpu: 0.0.40
codegen_flags: <defaults>
</compile_context>

<pallas_src>
import functools

import jax
import jax.numpy as jnp
from jax import lax
from jax.experimental import pallas as pl
from jax.experimental.pallas import tpu as pltpu

BAG_SIZE = 32          # config.BAG_SIZE
BN_EPS = 1e-5          # torch BatchNorm1d default eps
NUM_CORES = 2          # v7x megacore split; a cheap serial outer loop on v5e/v6e


def _round_up(x, m):
    return (x + m - 1) // m * m


def bag_input_kernel(tile_fb_ref, x_ref, w_ref, b_ref, off_ref, len_ref,
                     out_raw_ref, part_ref, acc_ref, *, bags_blk):
    """Streams row tiles: Linear+ReLU, raw writeback, bounded segment sums."""
    c = pl.program_id(0)                       # core (parallel) axis
    t = pl.program_id(1)                       # row-tile (arbitrary) axis
    tpc = pl.num_programs(1)
    g = c * tpc + t                            # global tile index
    tn = x_ref.shape[0]

    @pl.when(t == 0)
    def _():
        acc_ref[...] = jnp.zeros_like(acc_ref)

    # ---- Linear + ReLU on this row tile (single K = feat_len+num_feats dot) --
    y = jnp.dot(x_ref[...], w_ref[...], preferred_element_type=jnp.float32)
    y = jnp.maximum(y + b_ref[...], 0.0)               # (tn, BAG_SIZE)
    out_raw_ref[...] = y                               # 32-wide HBM writeback

    # ---- bounded per-tile segment partial sums -------------------------------
    # Only the <= bags_blk (non-empty-first sorted) bags that can overlap this
    # tile are considered; fb is precomputed in the wrapper (scalar prefetch)
    # and is always a multiple of 8 with fb + bags_blk <= b_pad.
    fb = pl.multiple_of(tile_fb_ref[g], 8)
    row = lax.broadcasted_iota(jnp.int32, (bags_blk, tn), 1) + g * tn
    off = off_ref[pl.ds(fb, bags_blk), :]              # (bags_blk, 1)
    ln = len_ref[pl.ds(fb, bags_blk), :]               # (bags_blk, 1)
    seg = ((row >= off) & (row < off + ln)).astype(jnp.float32)
    acc_ref[pl.ds(fb, bags_blk), :] += jnp.dot(
        seg, y, preferred_element_type=jnp.float32)

    # ---- flush this core's partial segment sums once per core ----------------
    @pl.when(t == tpc - 1)
    def _():
        part_ref[0, :, :] = acc_ref[...]


def bn_epilogue_kernel(part_ref, len_ref, gamma_ref, beta_ref, out_ref,
                       *, num_valid_bags):
    """Combine per-core partials, per-bag mean, CustomBatchNorm (batch stats)."""
    b_pad = part_ref.shape[1]
    sums = jnp.sum(part_ref[...], axis=0)              # (b_pad, BAG_SIZE)
    denom = jnp.maximum(len_ref[...], 1).astype(jnp.float32)
    x_agg = sums / denom                               # empty bags -> zero rows
    valid = (lax.broadcasted_iota(jnp.int32, (b_pad, 1), 0)
             < num_valid_bags).astype(jnp.float32)     # exclude padded bag rows
    inv_b = 1.0 / float(num_valid_bags)
    mu = jnp.sum(x_agg * valid, axis=0, keepdims=True) * inv_b
    diff = x_agg - mu
    var = jnp.sum(diff * diff * valid, axis=0, keepdims=True) * inv_b
    out_ref[...] = (diff * lax.rsqrt(var + BN_EPS)) * gamma_ref[...] + beta_ref[...]


def bag_input_forward(feats, mask, bags_len, W, b, gamma, beta, *,
                      tile_n=2048, num_cores=NUM_CORES, max_bags_per_tile=None):
    """feats: (N, feat_len), mask: (N, num_feats), bags_len: (B,) int,
    W: (feat_len+num_feats, BAG_SIZE), b/gamma/beta: (BAG_SIZE,).

    Returns (x_normalized (B, BAG_SIZE), x_raw (N, BAG_SIZE)).
    max_bags_per_tile: optional caller-provided bound on the number of bags
    overlapping any tn-row tile (e.g. tn/min_bag_len + 2); defaults to the
    always-safe tn + 8."""
    feats = feats.astype(jnp.float32)
    mask = mask.astype(jnp.float32)
    N, feat_len = feats.shape
    num_feats = mask.shape[1]
    K = feat_len + num_feats
    B = int(bags_len.shape[0])
    b_pad = _round_up(B, 8)

    tn = max(8, min(_round_up(tile_n, 8), _round_up(N, 8)))
    tiles_per_core = pl.cdiv(pl.cdiv(N, tn), num_cores)
    tiles_total = tiles_per_core * num_cores
    n_pad = tiles_total * tn

    # single concatenated input, zero-padded rows so the grid covers N exactly
    # (padded rows never match any bag because off + len <= N for every bag)
    x = jnp.concatenate([feats, mask], axis=1)
    x_p = jnp.zeros((n_pad, K), jnp.float32).at[:N].set(x)

    w_p = W.astype(jnp.float32)                                # (K, BAG_SIZE)
    b_p = b.astype(jnp.float32).reshape(1, BAG_SIZE)
    g_p = gamma.astype(jnp.float32).reshape(1, BAG_SIZE)
    bt_p = beta.astype(jnp.float32).reshape(1, BAG_SIZE)

    lens = bags_len.astype(jnp.int32)
    offs = jnp.cumsum(lens) - lens                             # exclusive cumsum
    lens_p = jnp.zeros((b_pad,), jnp.int32).at[:B].set(lens)
    offs_p = jnp.zeros((b_pad,), jnp.int32).at[:B].set(offs)

    # Compact non-empty bags to a contiguous, row-ordered prefix (stable sort)
    # so at most tn+1 of them overlap any row tile; empty bags (len == 0) never
    # contribute and are parked at the tail.
    order = jnp.argsort((lens_p == 0).astype(jnp.int32), stable=True)
    inv_order = jnp.argsort(order)
    lens_s = lens_p[order]
    offs_s = offs_p[order]

    if max_bags_per_tile is None:
        bags_blk = min(b_pad, tn + 8)                          # always safe
    else:
        bags_blk = min(b_pad, _round_up(max(int(max_bags_per_tile), 1), 8))

    # per-tile first overlapping (sorted) bag index, aligned down to 8 and
    # clipped so the static window [fb, fb + bags_blk) stays inside [0, b_pad)
    starts = jnp.arange(tiles_total, dtype=jnp.int32) * tn
    done = ((offs_s + lens_s)[None, :] <= starts[:, None]) & (lens_s[None, :] > 0)
    first = jnp.sum(done.astype(jnp.int32), axis=1)
    tile_fb = jnp.clip((first // 8) * 8, 0, b_pad - bags_blk).astype(jnp.int32)

    kernel = functools.partial(bag_input_kernel, bags_blk=bags_blk)
    flops = 2 * n_pad * K * BAG_SIZE + 2 * tiles_total * bags_blk * tn * BAG_SIZE
    bytes_accessed = 4 * (n_pad * K + n_pad * BAG_SIZE
                          + num_cores * b_pad * BAG_SIZE + (K + 1) * BAG_SIZE
                          + 2 * b_pad + tiles_total)

    out_raw_p, partials = pl.pallas_call(
        kernel,
        out_shape=(jax.ShapeDtypeStruct((n_pad, BAG_SIZE), jnp.float32),
                   jax.ShapeDtypeStruct((num_cores, b_pad, BAG_SIZE), jnp.float32)),
        grid_spec=pltpu.PrefetchScalarGridSpec(
            num_scalar_prefetch=1,
            grid=(num_cores, tiles_per_core),
            in_specs=[
                pl.BlockSpec((tn, K), lambda c, t, fb: (c * tiles_per_core + t, 0)),
                pl.BlockSpec((K, BAG_SIZE), lambda c, t, fb: (0, 0)),   # W
                pl.BlockSpec((1, BAG_SIZE), lambda c, t, fb: (0, 0)),   # bias
                pl.BlockSpec((b_pad, 1), lambda c, t, fb: (0, 0)),      # sorted offs
                pl.BlockSpec((b_pad, 1), lambda c, t, fb: (0, 0)),      # sorted lens
            ],
            out_specs=(
                pl.BlockSpec((tn, BAG_SIZE),
                             lambda c, t, fb: (c * tiles_per_core + t, 0)),  # x_raw
                pl.BlockSpec((1, b_pad, BAG_SIZE),
                             lambda c, t, fb: (c, 0, 0)),                    # partials
            ),
            scratch_shapes=[pltpu.VMEM((b_pad, BAG_SIZE), jnp.float32)],
        ),
        compiler_params=pltpu.CompilerParams(
            dimension_semantics=("parallel", "arbitrary")),
        cost_estimate=pl.CostEstimate(
            flops=flops, transcendentals=0, bytes_accessed=bytes_accessed),
    )(tile_fb, x_p, w_p, b_p, offs_s.reshape(b_pad, 1), lens_s.reshape(b_pad, 1))

    # tiny: undo the non-empty-first permutation before the BN epilogue
    partials = partials[:, inv_order, :]

    out_norm_p = pl.pallas_call(
        functools.partial(bn_epilogue_kernel, num_valid_bags=B),
        out_shape=jax.ShapeDtypeStruct((b_pad, BAG_SIZE), jnp.float32),
    )(partials, lens_p.reshape(b_pad, 1), g_p, bt_p)

    return out_norm_p[:B], out_raw_p[:N]


def reference_forward(feats, mask, bags_len, W, b, gamma, beta):
    """Pure-JAX reference mirroring the PyTorch forward."""
    x = jnp.concatenate([feats, mask], axis=1).astype(jnp.float32)
    y = jnp.maximum(x @ W + b, 0.0)
    B = int(bags_len.shape[0])
    offs = jnp.cumsum(bags_len) - bags_len
    rows = []
    for i in range(B):
        l = int(bags_len[i]); o = int(offs[i])
        rows.append(jnp.zeros((BAG_SIZE,), jnp.float32) if l == 0
                    else jnp.mean(y[o:o + l], axis=0))
    xa = jnp.stack(rows)
    mu = xa.mean(axis=0)
    var = ((xa - mu) ** 2).mean(axis=0)
    xn = (xa - mu) / jnp.sqrt(var + BN_EPS) * gamma + beta
    return xn, y


if __name__ == "__main__":
    key = jax.random.PRNGKey(0)
    k1, k2, k3, k4, k5, k6 = jax.random.split(key, 6)

    # meta: feat_len = 16, len(meta.feat_idx) = 4 -> Linear in_features = 20
    feat_len, num_feats = 16, 4
    B = 40
    # deterministic bag lengths 0..4 (8 empty bags), total N = 80 samples
    bags_len = jnp.array([(i * 7) % 5 for i in range(B)], dtype=jnp.int32)
    N = int(bags_len.sum())

    feats = jax.random.normal(k1, (N, feat_len), jnp.float32)
    mask = (jax.random.uniform(k2, (N, num_feats)) > 0.5).astype(jnp.float32)

    D = feat_len + num_feats
    W = 0.1 * jax.random.normal(k3, (D, BAG_SIZE), jnp.float32)
    b = 0.1 * jax.random.normal(k4, (BAG_SIZE,), jnp.float32)
    gamma = 1.0 + 0.1 * jax.random.normal(k5, (BAG_SIZE,), jnp.float32)
    beta = 0.1 * jax.random.normal(k6, (BAG_SIZE,), jnp.float32)

    ref_norm, ref_raw = reference_forward(feats, mask, bags_len, W, b, gamma, beta)

    # (1) small tile: exercises the multi-step grid per core and the bounded
    #     (dynamic first-bag window) segment accumulation path
    x_norm, x_raw = bag_input_forward(feats, mask, bags_len, W, b, gamma, beta,
                                      tile_n=16)
    jax.block_until_ready((x_norm, x_raw))
    assert x_raw.shape == (N, BAG_SIZE) and x_norm.shape == (B, BAG_SIZE)
    assert jnp.allclose(x_raw, ref_raw, atol=1e-4, rtol=1e-4)
    assert jnp.allclose(x_norm, ref_norm, atol=1e-4, rtol=1e-4)

    # (2) default (large) tile: single tile per core, full-bag window
    x_norm2, x_raw2 = bag_input_forward(feats, mask, bags_len, W, b, gamma, beta)
    jax.block_until_ready((x_norm2, x_raw2))
    assert jnp.allclose(x_raw2, ref_raw, atol=1e-4, rtol=1e-4)
    assert jnp.allclose(x_norm2, ref_norm, atol=1e-4, rtol=1e-4)

    print("KERNEL_OK")
</pallas_src>

<mosaic_0001>
module attributes {stable_mosaic.version = 11 : i64} {
  func.func @bag_input_kernel(%arg0: i32, %arg1: i32, %arg2: memref<6xi32, #tpu.memory_space<smem>>, %arg3: memref<16x20xf32, #tpu.memory_space<vmem>>, %arg4: memref<20x32xf32, #tpu.memory_space<vmem>>, %arg5: memref<1x32xf32, #tpu.memory_space<vmem>>, %arg6: memref<40x1xi32, #tpu.memory_space<vmem>>, %arg7: memref<40x1xi32, #tpu.memory_space<vmem>>, %arg8: memref<16x32xf32, #tpu.memory_space<vmem>>, %arg9: memref<1x40x32xf32, #tpu.memory_space<vmem>>, %arg10: memref<40x32xf32, #tpu.memory_space<vmem>>) attributes {dimension_semantics = [#tpu.dimension_semantics<parallel>, #tpu.dimension_semantics<arbitrary>], iteration_bounds = array<i64: 2, 3>, scalar_prefetch = 1 : i64, scratch_operands = 1 : i64, tpu.core_type = #tpu.core_type<tc>, window_params = [{transform_indices = @transform_0, window_bounds = array<i64: 16, 20>}, {pipeline_mode = #tpu.pipeline_mode<synchronous>, transform_indices = @transform_1, window_bounds = array<i64: 20, 32>}, {pipeline_mode = #tpu.pipeline_mode<synchronous>, transform_indices = @transform_2, window_bounds = array<i64: 1, 32>}, {pipeline_mode = #tpu.pipeline_mode<synchronous>, transform_indices = @transform_3, window_bounds = array<i64: 40, 1>}, {pipeline_mode = #tpu.pipeline_mode<synchronous>, transform_indices = @transform_4, window_bounds = array<i64: 40, 1>}, {transform_indices = @transform_5, window_bounds = array<i64: 16, 32>}, {transform_indices = @transform_6, window_bounds = array<i64: 1, 40, 32>}]} {
    %c3_i32 = arith.constant 3 : i32
    %0 = arith.muli %arg0, %c3_i32 : i32
    %1 = arith.addi %0, %arg1 : i32
    %c0_i32 = arith.constant 0 : i32
    %2 = arith.cmpi eq, %arg1, %c0_i32 : i32
    %3 = arith.extui %2 : i1 to i32
    %c0_i32_0 = arith.constant 0 : i32
    %4 = arith.cmpi ne, %3, %c0_i32_0 : i32
    scf.if %4 {
      %cst_15 = arith.constant 0.000000e+00 : f32
      %42 = vector.broadcast %cst_15 : f32 to vector<40x32xf32>
      %c0_16 = arith.constant 0 : index
      %c0_17 = arith.constant 0 : index
      %43 = vector.load %arg10[%c0_16, %c0_17] : memref<40x32xf32, #tpu.memory_space<vmem>>, vector<40x32xf32>
      tpu.vector_store %arg10[%c0_16, %c0_17], %42 {strides = array<i32>} : memref<40x32xf32, #tpu.memory_space<vmem>>, vector<40x32xf32>,
    } else {
    }
    %c0 = arith.constant 0 : index
    %c0_1 = arith.constant 0 : index
    %5 = vector.load %arg3[%c0, %c0_1] : memref<16x20xf32, #tpu.memory_space<vmem>>, vector<16x20xf32>
    %c0_2 = arith.constant 0 : index
    %c0_3 = arith.constant 0 : index
    %6 = vector.load %arg4[%c0_2, %c0_3] : memref<20x32xf32, #tpu.memory_space<vmem>>, vector<20x32xf32>
    %cst = arith.constant dense<0.000000e+00> : vector<16x32xf32>
    %7 = tpu.matmul %5, %6, %cst {dimension_numbers = #tpu.dot_dimension_numbers<[1], [0], [0], [1], [0, 0, 1, 1], [], []>} : vector<16x20xf32>, vector<20x32xf32>, vector<16x32xf32> -> vector<16x32xf32>
    %c0_4 = arith.constant 0 : index
    %c0_5 = arith.constant 0 : index
    %8 = vector.load %arg5[%c0_4, %c0_5] : memref<1x32xf32, #tpu.memory_space<vmem>>, vector<1x32xf32>
    %9 = vector.broadcast %8 : vector<1x32xf32> to vector<16x32xf32>
    %10 = arith.addf %7, %9 : vector<16x32xf32>
    %cst_6 = arith.constant 0.000000e+00 : f32
    %11 = vector.broadcast %cst_6 : f32 to vector<16x32xf32>
    %12 = arith.maximumf %10, %11 : vector<16x32xf32>
    %c0_7 = arith.constant 0 : index
    %c0_8 = arith.constant 0 : index
    %13 = vector.load %arg8[%c0_7, %c0_8] : memref<16x32xf32, #tpu.memory_space<vmem>>, vector<16x32xf32>
    tpu.vector_store %arg8[%c0_7, %c0_8], %12 {strides = array<i32>} : memref<16x32xf32, #tpu.memory_space<vmem>>, vector<16x32xf32>,
    %14 = arith.index_cast %1 : i32 to index
    %15 = memref.load %arg2[%14] : memref<6xi32, #tpu.memory_space<smem>>
    %16 = tpu.assume_multiple %15, 8 : i32
    %17 = tpu.iota {dimensions = array<i32: 1>} : vector<24x16xi32>
    %c16_i32 = arith.constant 16 : i32
    %18 = arith.muli %1, %c16_i32 : i32
    %19 = vector.broadcast %18 : i32 to vector<24x16xi32>
    %20 = arith.addi %17, %19 : vector<24x16xi32>
    %21 = arith.index_cast %16 : i32 to index
    %c0_9 = arith.constant 0 : index
    %22 = vector.load %arg6[%21, %c0_9] : memref<40x1xi32, #tpu.memory_space<vmem>>, vector<24x1xi32>
    %23 = arith.index_cast %16 : i32 to index
    %c0_10 = arith.constant 0 : index
    %24 = vector.load %arg7[%23, %c0_10] : memref<40x1xi32, #tpu.memory_space<vmem>>, vector<24x1xi32>
    %25 = vector.broadcast %22 : vector<24x1xi32> to vector<24x16xi32>
    %26 = arith.cmpi sge, %20, %25 : vector<24x16xi32>
    %27 = arith.addi %22, %24 : vector<24x1xi32>
    %28 = vector.broadcast %27 : vector<24x1xi32> to vector<24x16xi32>
    %29 = arith.cmpi slt, %20, %28 : vector<24x16xi32>
    %30 = arith.andi %26, %29 : vector<24x16xi1>
    %31 = arith.extui %30 : vector<24x16xi1> to vector<24x16xi32>
    %32 = arith.sitofp %31 : vector<24x16xi32> to vector<24x16xf32>
    %33 = arith.index_cast %16 : i32 to index
    %c0_11 = arith.constant 0 : index
    %34 = vector.load %arg10[%33, %c0_11] : memref<40x32xf32, #tpu.memory_space<vmem>>, vector<24x32xf32>
    %cst_12 = arith.constant dense<0.000000e+00> : vector<24x32xf32>
    %35 = tpu.matmul %32, %12, %cst_12 {dimension_numbers = #tpu.dot_dimension_numbers<[1], [0], [0], [1], [0, 0, 1, 1], [], []>} : vector<24x16xf32>, vector<16x32xf32>, vector<24x32xf32> -> vector<24x32xf32>
    %36 = arith.addf %34, %35 : vector<24x32xf32>
    %37 = arith.index_cast %16 : i32 to index
    %c0_13 = arith.constant 0 : index
    %38 = vector.load %arg10[%37, %c0_13] : memref<40x32xf32, #tpu.memory_space<vmem>>, vector<24x32xf32>
    tpu.vector_store %arg10[%37, %c0_13], %36 {strides = array<i32>} : memref<40x32xf32, #tpu.memory_space<vmem>>, vector<24x32xf32>,
    %c2_i32 = arith.constant 2 : i32
    %39 = arith.cmpi eq, %arg1, %c2_i32 : i32
    %40 = arith.extui %39 : i1 to i32
    %c0_i32_14 = arith.constant 0 : i32
    %41 = arith.cmpi ne, %40, %c0_i32_14 : i32
    scf.if %41 {
      %c0_15 = arith.constant 0 : index
      %c0_16 = arith.constant 0 : index
      %42 = vector.load %arg10[%c0_15, %c0_16] : memref<40x32xf32, #tpu.memory_space<vmem>>, vector<40x32xf32>
      %c0_17 = arith.constant 0 : index
      %c0_18 = arith.constant 0 : index
      %c0_19 = arith.constant 0 : index
      %43 = vector.load %arg9[%c0_17, %c0_18, %c0_19] : memref<1x40x32xf32, #tpu.memory_space<vmem>>, vector<1x40x32xf32>
      %44 = vector.shape_cast %43 : vector<1x40x32xf32> to vector<40x32xf32>
      %45 = vector.shape_cast %42 : vector<40x32xf32> to vector<1x40x32xf32>
      tpu.vector_store %arg9[%c0_17, %c0_18, %c0_19], %45 {strides = array<i32>} : memref<1x40x32xf32, #tpu.memory_space<vmem>>, vector<1x40x32xf32>,
    } else {
    }
    return
  }
  func.func @transform_0(%arg0: i32, %arg1: i32, %arg2: memref<6xi32, #tpu.memory_space<smem>>) -> (i32, i32) {
    %c3_i32 = arith.constant 3 : i32
    %0 = arith.muli %arg0, %c3_i32 : i32
    %1 = arith.addi %0, %arg1 : i32
    %c0_i32 = arith.constant 0 : i32
    %c0_i32_0 = arith.constant 0 : i32
    return %1, %c0_i32 : i32, i32
  }
  func.func @transform_1(%arg0: i32, %arg1: i32, %arg2: memref<6xi32, #tpu.memory_space<smem>>) -> (i32, i32) {
    %c0_i32 = arith.constant 0 : i32
    %c0_i32_0 = arith.constant 0 : i32
    %c0_i32_1 = arith.constant 0 : i32
    return %c0_i32, %c0_i32_0 : i32, i32
  }
  func.func @transform_2(%arg0: i32, %arg1: i32, %arg2: memref<6xi32, #tpu.memory_space<smem>>) -> (i32, i32) {
    %c0_i32 = arith.constant 0 : i32
    %c0_i32_0 = arith.constant 0 : i32
    %c0_i32_1 = arith.constant 0 : i32
    return %c0_i32, %c0_i32_0 : i32, i32
  }
  func.func @transform_3(%arg0: i32, %arg1: i32, %arg2: memref<6xi32, #tpu.memory_space<smem>>) -> (i32, i32) {
    %c0_i32 = arith.constant 0 : i32
    %c0_i32_0 = arith.constant 0 : i32
    %c0_i32_1 = arith.constant 0 : i32
    return %c0_i32, %c0_i32_0 : i32, i32
  }
  func.func @transform_4(%arg0: i32, %arg1: i32, %arg2: memref<6xi32, #tpu.memory_space<smem>>) -> (i32, i32) {
    %c0_i32 = arith.constant 0 : i32
    %c0_i32_0 = arith.constant 0 : i32
    %c0_i32_1 = arith.constant 0 : i32
    return %c0_i32, %c0_i32_0 : i32, i32
  }
  func.func @transform_5(%arg0: i32, %arg1: i32, %arg2: memref<6xi32, #tpu.memory_space<smem>>) -> (i32, i32) {
    %c3_i32 = arith.constant 3 : i32
    %0 = arith.muli %arg0, %c3_i32 : i32
    %1 = arith.addi %0, %arg1 : i32
    %c0_i32 = arith.constant 0 : i32
    %c0_i32_0 = arith.constant 0 : i32
    return %1, %c0_i32 : i32, i32
  }
  func.func @transform_6(%arg0: i32, %arg1: i32, %arg2: memref<6xi32, #tpu.memory_space<smem>>) -> (i32, i32, i32) {
    %c0_i32 = arith.constant 0 : i32
    %c0_i32_0 = arith.constant 0 : i32
    %c0_i32_1 = arith.constant 0 : i32
    return %arg0, %c0_i32, %c0_i32_0 : i32, i32, i32
  }
}

</mosaic_0001>

<llo_original>
// kernel: tpu_custom_call.1
$region0: #{tpu_custom_call.1}
  #allocation0 [shape = 'u32[]', space=smem, size = 0x4, offset = 0x4, fixed_abs, tag = 'smem constant byte address 0x4 - core index']
  #allocation1 [shape = 'u32[144,128]{1,0:T(1,128)}', space=vmem, size = 0x12000, scoped, tag = 'internal scratch']
  #allocation2 [shape = 'f32[40,32]{1,0:T(8,128)}', space=vmem, size = 0x5000, scoped, tag = 'scratch operand']
  #allocation3 [shape = 's32[1]{0}', space=sflag, size = 0x4, scoped, tag = 'scoped memory for tpu_custom_call.1']
  #allocation4 [shape = 'u8[512]{0}', space=smem, size = 0x200, scoped, tag = 'prefetched SMEM operand 0']
  %s0 = inlined_call_operand.vmem [shape: s32[6], index: 0, kind: input, shape index: {}]
  %s1 = inlined_call_operand.vmem [shape: f32[96,20], index: 1, kind: input, shape index: {}]
  %s2 = inlined_call_operand.vmem [shape: f32[20,32], index: 2, kind: input, shape index: {}]
  %s3 = inlined_call_operand.vmem [shape: f32[1,32], index: 3, kind: input, shape index: {}]
  %s4 = inlined_call_operand.vmem [shape: s32[40,1], index: 4, kind: input, shape index: {}]
  %s5 = inlined_call_operand.vmem [shape: s32[40,1], index: 5, kind: input, shape index: {}]
  %s6 = inlined_call_operand.vmem [shape: f32[96,32], index: 6, kind: output, shape index: {0}]
  %s7 = inlined_call_operand.vmem [shape: f32[2,40,32], index: 7, kind: output, shape index: {1}]
  %8 = xla_tuple %s6, %s7
  %s9 = sld [smem:[#allocation0]]
  $region69: #{tpu_custom_call.1} parent=0
    _
  %s11 = ssub.s32 1, %s9
  %s12 = scalar_select 0, %s11, %s9
  %s13 = sshll.u32 %s0, 4
  %s14 = int_to_ptr.vmem [resolvable:$true] %s13
  %16 = dma.vmem_to_smem %s14, 16, [#allocation4], [#allocation3]
  %17 = dma.done [#allocation3], 16
  %18 = sfence
  loop: start=0, step=1, limit=8
  $region2: #{tpu_custom_call.1} parent=0 // loop_pre_header
    _
  $region3: #{tpu_custom_call.1} parent=0 // loop_header
    %s20 = sphi 0, %s24
    %p21 = scmp.ge.s32.totalorder %s20, 8
    %s27 = sphi 0, %s39
    %s28 = sphi 0, %s35
    %s29 = sphi 0, %s27
    %s30 = sphi 0, %s28
    %s31 = sphi 0, %s29
    %s32 = sphi 0, %s30
    %s46 = sphi 0, %s48
    %s49 = sphi 0, %s46
    %s50 = sphi 0, %s49
    %s66 = sphi 0, %s50
    %s70 = sphi 0, %s70
    %s72 = sphi 0, %s70
    %s73 = sphi 0, %s72
    %s87 = sphi 0, %s73
    %s91 = sphi 0, %s91
    %s93 = sphi 0, %s91
    %s94 = sphi 0, %s93
    %s108 = sphi 0, %s94
    %s112 = sphi 0, %s112
    %s114 = sphi 0, %s112
    %s115 = sphi 0, %s114
    %s129 = sphi 0, %s115
    %s133 = sphi 0, %s133
    %s135 = sphi 0, %s133
    %s136 = sphi 0, %s135
    %s150 = sphi 0, %s136
    %s160 = sphi 0, %s162
    %s163 = sphi 0, %s160
    %s164 = sphi 0, %s163
    %s180 = sphi 0, %s164
    %s186 = sphi 0, %s188
    %s189 = sphi 0, %s186
    %s190 = sphi 0, %s189
    %s206 = sphi 0, %s190
  $region4: #{tpu_custom_call.1} parent=0 // loop_header_branch
    %23 = sbr.rel (%p21) target = $region8
  $region5: #{tpu_custom_call.1} parent=0 // loop_body
    %s25 = ssub.s32 %s20, 1
    %s26 = ssub.s32 %s20, 2
    %s33 = sadd.s32 1, %s28
    %p34 = scmp.ge.s32.totalorder %s33, 3
    %s35 = scalar_select %p34, 0, %s33
    %s36 = sadd.s32 1, %s27
    %s37 = scalar_select %p34, %s36, %s27
    %p38 = scmp.ge.s32.totalorder %s37, 2
    %s39 = scalar_select %p38, 0, %s37
    %s40 = smul.u32 %s27, 3
    %s41 = sadd.s32 %s40, %s28
    %s42 = smul.u32 %s39, 3
    %s43 = sadd.s32 %s42, %s35
    %s44 = ssub.s32 %s41, %s43
    %p45 = scmp.eq.s32.totalorder %s44, 0
    %s47 = sadd.s32 %s46, 1
    %s48 = scalar_select %p45, %s46, %s47
    %p51 = pneg %p45
    %p52 = scmp.eq.s32.totalorder %s20, 5
    %p53 = por %p51, %p52
    %p54 = scmp.ne.s32.totalorder %s46, %s49
    %p55 = scmp.eq.s32.totalorder %s20, 0
    %p56 = por %p54, %p55
    %p57 = scmp.ne.s32.totalorder %s46, %s49
    %p58 = scmp.eq.s32.totalorder %s25, 5
    %p59 = por %p57, %p58
    %p60 = scmp.ne.s32.totalorder %s49, %s50
    %p61 = scmp.eq.s32.totalorder %s25, 0
    %p62 = por %p60, %p61
    %p63 = scmp.ne.s32.totalorder %s49, %s50
    %p64 = scmp.eq.s32.totalorder %s26, 5
    %p65 = por %p63, %p64
    %p67 = scmp.ne.s32.totalorder %s50, %s66
    %p68 = scmp.eq.s32.totalorder %s26, 0
    %p69 = por %p67, %p68
    %s71 = sadd.s32 %s70, 1
    %p74 = scmp.eq.s32.totalorder %s20, 5
    %p75 = scmp.ne.s32.totalorder %s70, %s72
    %p76 = scmp.eq.s32.totalorder %s20, 0
    %p77 = por %p75, %p76
    %p78 = scmp.ne.s32.totalorder %s70, %s72
    %p79 = scmp.eq.s32.totalorder %s25, 5
    %p80 = por %p78, %p79
    %p81 = scmp.ne.s32.totalorder %s72, %s73
    %p82 = scmp.eq.s32.totalorder %s25, 0
    %p83 = por %p81, %p82
    %p84 = scmp.ne.s32.totalorder %s72, %s73
    %p85 = scmp.eq.s32.totalorder %s26, 5
    %p86 = por %p84, %p85
    %p88 = scmp.ne.s32.totalorder %s73, %s87
    %p89 = scmp.eq.s32.totalorder %s26, 0
    %p90 = por %p88, %p89
    %s92 = sadd.s32 %s91, 1
    %p95 = scmp.eq.s32.totalorder %s20, 5
    %p96 = scmp.ne.s32.totalorder %s91, %s93
    %p97 = scmp.eq.s32.totalorder %s20, 0
    %p98 = por %p96, %p97
    %p99 = scmp.ne.s32.totalorder %s91, %s93
    %p100 = scmp.eq.s32.totalorder %s25, 5
    %p101 = por %p99, %p100
    %p102 = scmp.ne.s32.totalorder %s93, %s94
    %p103 = scmp.eq.s32.totalorder %s25, 0
    %p104 = por %p102, %p103
    %p105 = scmp.ne.s32.totalorder %s93, %s94
    %p106 = scmp.eq.s32.totalorder %s26, 5
    %p107 = por %p105, %p106
    %p109 = scmp.ne.s32.totalorder %s94, %s108
    %p110 = scmp.eq.s32.totalorder %s26, 0
    %p111 = por %p109, %p110
    %s113 = sadd.s32 %s112, 1
    %p116 = scmp.eq.s32.totalorder %s20, 5
    %p117 = scmp.ne.s32.totalorder %s112, %s114
    %p118 = scmp.eq.s32.totalorder %s20, 0
    %p119 = por %p117, %p118
    %p120 = scmp.ne.s32.totalorder %s112, %s114
    %p121 = scmp.eq.s32.totalorder %s25, 5
    %p122 = por %p120, %p121
    %p123 = scmp.ne.s32.totalorder %s114, %s115
    %p124 = scmp.eq.s32.totalorder %s25, 0
    %p125 = por %p123, %p124
    %p126 = scmp.ne.s32.totalorder %s114, %s115
    %p127 = scmp.eq.s32.totalorder %s26, 5
    %p128 = por %p126, %p127
    %p130 = scmp.ne.s32.totalorder %s115, %s129
    %p131 = scmp.eq.s32.totalorder %s26, 0
    %p132 = por %p130, %p131
    %s134 = sadd.s32 %s133, 1
    %p137 = scmp.eq.s32.totalorder %s20, 5
    %p138 = scmp.ne.s32.totalorder %s133, %s135
    %p139 = scmp.eq.s32.totalorder %s20, 0
    %p140 = por %p138, %p139
    %p141 = scmp.ne.s32.totalorder %s133, %s135
    %p142 = scmp.eq.s32.totalorder %s25, 5
    %p143 = por %p141, %p142
    %p144 = scmp.ne.s32.totalorder %s135, %s136
    %p145 = scmp.eq.s32.totalorder %s25, 0
    %p146 = por %p144, %p145
    %p147 = scmp.ne.s32.totalorder %s135, %s136
    %p148 = scmp.eq.s32.totalorder %s26, 5
    %p149 = por %p147, %p148
    %p151 = scmp.ne.s32.totalorder %s136, %s150
    %p152 = scmp.eq.s32.totalorder %s26, 0
    %p153 = por %p151, %p152
    %s154 = smul.u32 %s27, 3
    %s155 = sadd.s32 %s154, %s28
    %s156 = smul.u32 %s39, 3
    %s157 = sadd.s32 %s156, %s35
    %s158 = ssub.s32 %s155, %s157
    %p159 = scmp.eq.s32.totalorder %s158, 0
    %s161 = sadd.s32 %s160, 1
    %s162 = scalar_select %p159, %s160, %s161
    %p165 = pneg %p159
    %p166 = scmp.eq.s32.totalorder %s20, 5
    %p167 = por %p165, %p166
    %p168 = scmp.ne.s32.totalorder %s160, %s163
    %p169 = scmp.eq.s32.totalorder %s20, 0
    %p170 = por %p168, %p169
    %p171 = scmp.ne.s32.totalorder %s160, %s163
    %p172 = scmp.eq.s32.totalorder %s25, 5
    %p173 = por %p171, %p172
    %p174 = scmp.ne.s32.totalorder %s163, %s164
    %p175 = scmp.eq.s32.totalorder %s25, 0
    %p176 = por %p174, %p175
    %p177 = scmp.ne.s32.totalorder %s163, %s164
    %p178 = scmp.eq.s32.totalorder %s26, 5
    %p179 = por %p177, %p178
    %p181 = scmp.ne.s32.totalorder %s164, %s180
    %p182 = scmp.eq.s32.totalorder %s26, 0
    %p183 = por %p181, %p182
    %s184 = ssub.s32 %s27, %s39
    %p185 = scmp.eq.s32.totalorder %s184, 0
    %s187 = sadd.s32 %s186, 1
    %s188 = scalar_select %p185, %s186, %s187
    %p191 = pneg %p185
    %p192 = scmp.eq.s32.totalorder %s20, 5
    %p193 = por %p191, %p192
    %p194 = scmp.ne.s32.totalorder %s186, %s189
    %p195 = scmp.eq.s32.totalorder %s20, 0
    %p196 = por %p194, %p195
    %p197 = scmp.ne.s32.totalorder %s186, %s189
    %p198 = scmp.eq.s32.totalorder %s25, 5
    %p199 = por %p197, %p198
    %p200 = scmp.ne.s32.totalorder %s189, %s190
    %p201 = scmp.eq.s32.totalorder %s25, 0
    %p202 = por %p200, %p201
    %p203 = scmp.ne.s32.totalorder %s189, %s190
    %p204 = scmp.eq.s32.totalorder %s26, 5
    %p205 = por %p203, %p204
    %p207 = scmp.ne.s32.totalorder %s190, %s206
    %p208 = scmp.eq.s32.totalorder %s26, 0
    %p209 = por %p207, %p208
    %p210 = scmp.le.s32.totalorder 1, %s20
    %p211 = scmp.lt.s32.totalorder %s20, 7
    %p212 = pnand %p210, %p211
    %p213 = pneg %p212
    // Predicated region
    $region9: #{tpu_custom_call.1} parent=5 // pred_check
      _
    $region10: #{tpu_custom_call.1} parent=5 // pred_check_branch
      %215 = sbr.rel (%p212) target = $region12
    $region11: #{tpu_custom_call.1} parent=5 // pred_region
      %s216 = ssub.s32 %s20, 1
      // Predicated region
      $region13: #{tpu_custom_call.1} parent=11 // pred_check
        %p217 = pneg %p83
      $region14: #{tpu_custom_call.1} parent=11 // pred_check_branch
        %219 = sbr.rel (%p217) target = $region16
      $region15: #{tpu_custom_call.1} parent=11 // pred_region
        _
      $region16: #{tpu_custom_call.1} parent=11 // pred_fallthru
        _
      // Predicated region
      $region17: #{tpu_custom_call.1} parent=11 // pred_check
        %p220 = pneg %p104
      $region18: #{tpu_custom_call.1} parent=11 // pred_check_branch
        %222 = sbr.rel (%p220) target = $region20
      $region19: #{tpu_custom_call.1} parent=11 // pred_region
        _
      $region20: #{tpu_custom_call.1} parent=11 // pred_fallthru
        _
      // Predicated region
      $region21: #{tpu_custom_call.1} parent=11 // pred_check
        %p223 = pneg %p125
      $region22: #{tpu_custom_call.1} parent=11 // pred_check_branch
        %225 = sbr.rel (%p223) target = $region24
      $region23: #{tpu_custom_call.1} parent=11 // pred_region
        _
      $region24: #{tpu_custom_call.1} parent=11 // pred_fallthru
        _
      // Predicated region
      $region25: #{tpu_custom_call.1} parent=11 // pred_check
        %p226 = pneg %p146
      $region26: #{tpu_custom_call.1} parent=11 // pred_check_branch
        %228 = sbr.rel (%p226) target = $region28
      $region27: #{tpu_custom_call.1} parent=11 // pred_region
        _
      $region28: #{tpu_custom_call.1} parent=11 // pred_fallthru
        _
    $region12: #{tpu_custom_call.1} parent=5 // pred_fallthru
      _
    %p229 = scmp.lt.s32.totalorder %s20, 6
    // Predicated region
    $region29: #{tpu_custom_call.1} parent=5 // pred_check
      %p230 = pneg %p229
    $region30: #{tpu_custom_call.1} parent=5 // pred_check_branch
      %232 = sbr.rel (%p230) target = $region32
    $region31: #{tpu_custom_call.1} parent=5 // pred_region
      // Predicated region
      $region33: #{tpu_custom_call.1} parent=31 // pred_check
        %p233 = pneg %p56
      $region34: #{tpu_custom_call.1} parent=31 // pred_check_branch
        %235 = sbr.rel (%p233) target = $region36
      $region35: #{tpu_custom_call.1} parent=31 // pred_region
        %s236 = smul.u32 %s27, 3
        %s237 = sadd.s32 %s236, %s28
        %s238 = smul.u32 2, %s237
        %p239 = scmp.lt.s32.totalorder %s238, 11
        %s240 = scalar_select %p239, %s238, 11
        %s241 = smul.addr %s240, 8
        %s242 = scalar_lea.vmem %s1, %s241
        %s243 = smul.u32 %s27, 3
        %s244 = sadd.s32 %s243, %s28
        %s245 = smul.u32 2, %s244
      $region36: #{tpu_custom_call.1} parent=31 // pred_fallthru
        _
    $region32: #{tpu_custom_call.1} parent=5 // pred_fallthru
      _
    %p246 = scmp.le.s32.totalorder 1, %s20
    %p247 = scmp.lt.s32.totalorder %s20, 7
    %p248 = pnand %p246, %p247
    %p249 = pneg %p248
    // Predicated region
    $region37: #{tpu_custom_call.1} parent=5 // pred_check
      _
    $region38: #{tpu_custom_call.1} parent=5 // pred_check_branch
      %251 = sbr.rel (%p248) target = $region40
    $region39: #{tpu_custom_call.1} parent=5 // pred_region
      %s252 = ssub.s32 %s20, 1
      %s253 = smul.u32 %s29, 3
      %s254 = sadd.s32 %s253, %s30
      %s255 = smul.u32 2, %s254
      %p256 = scmp.lt.s32.totalorder %s255, 11
      %s257 = scalar_select %p256, %s255, 11
      %s258 = smul.addr %s257, 8
      %s259 = scalar_lea.vmem %s1, %s258
      %p260 = pneg %p62
      %p261 = pneg %p59
      %p262 = pneg %p83
      %p263 = pneg %p80
      %p264 = pneg %p104
      %p265 = pneg %p101
      %p266 = pneg %p125
      %p267 = pneg %p122
      %p268 = pneg %p146
      %p269 = pneg %p143
      %p270 = pneg %p176
      %p271 = pneg %p173
      %s272 = smul.u32 %s29, 3
      %s273 = sadd.s32 %s272, %s30
      %s274 = smul.u32 2, %s273
      %p275 = scmp.lt.s32.totalorder %s274, 11
      %s276 = scalar_select %p275, %s274, 11
      %s277 = smul.addr %s276, 8
      %s278 = scalar_lea.vmem %s6, %s277
      %p279 = pneg %p202
      %p280 = pneg %p199
      %p281 = scmp.lt.s32.totalorder %s29, 1
      %s282 = scalar_select %p281, %s29, 1
      %s283 = smul.addr %s282, 5
      %s284 = smul.addr %s283, 8
      %s285 = scalar_lea.vmem %s7, %s284
      %s286 = smul.u32 %s29, 3
      %s287 = sadd.s32 %s286, %s30
      %s288 = smul.u32 2, %s287
      %p289 = scmp.lt.s32.totalorder %s288, 11
      %s290 = scalar_select %p289, %s288, 11
      %s291 = smul.addr %s290, 8
      %s292 = scalar_lea.vmem %s1, %s291
      %s293 = smul.u32 %s29, 3
      %s294 = sadd.s32 %s293, %s30
      %s295 = smul.u32 2, %s294
      %s296 = smul.u32 %s29, 3
      %s297 = sadd.s32 %s296, %s30
      %s298 = smul.u32 2, %s297
      %p299 = scmp.lt.s32.totalorder %s298, 11
      %s300 = scalar_select %p299, %s298, 11
      %s301 = smul.addr %s300, 8
      %s302 = scalar_lea.vmem %s6, %s301
      %s303 = smul.u32 %s29, 3
      %s304 = sadd.s32 %s303, %s30
      %s305 = smul.u32 2, %s304
      %p306 = scmp.lt.s32.totalorder %s29, 1
      %s307 = scalar_select %p306, %s29, 1
      %s308 = smul.addr %s307, 5
      %s309 = smul.addr %s308, 8
      %s310 = scalar_lea.vmem %s7, %s309
      %s311 = smul.u32 %s29, 3
      %s312 = sadd.s32 %s311, %s30
      %p313 = scmp.eq.s32.totalorder %s30, 0
      // Predicated region
      $region41: #{tpu_custom_call.1} parent=39 // pred_check
        %p314 = pneg %p313
      $region42: #{tpu_custom_call.1} parent=39 // pred_check_branch
        %316 = sbr.rel (%p314) target = $region44
      $region43: #{tpu_custom_call.1} parent=39 // pred_region
        %vm317 = vcmask 261120
        %318 = vst.msk [vmem:[#allocation2] sm:$0xff] %vm317, 0.0
        %319 = vst.msk [vmem:[#allocation2 + $0x8] sm:$0xff] %vm317, 0.0
        %320 = vst.msk [vmem:[#allocation2 + $0x10] sm:$0xff] %vm317, 0.0
        %321 = vst.msk [vmem:[#allocation2 + $0x18] sm:$0xff] %vm317, 0.0
        %322 = vst.msk [vmem:[#allocation2 + $0x20] sm:$0xff] %vm317, 0.0
      $region44: #{tpu_custom_call.1} parent=39 // pred_fallthru
        _
      %v323 = vld [vmem:[%s292] sm:$0xff]
      %v324 = vld [vmem:[%s292 + $0x8] sm:$0xff]
      %v325 = vld [vmem:[%s2] sm:$0xff]
      %v326 = vld [vmem:[%s2 + $0x8] sm:$0xff]
      %v327 = vld [vmem:[%s2 + $0x10] sm:$0xf]
      %v328 = vld [vmem:[%s3] sm:$0x1]
      %v330 = vlaneseq
      %v331 = vshrl.u32 %v330, 7
      %v332 = vsub.s32 0, %v331
      %v333 = vrot.slane %v328, %v332
      %vm335 = vcmask 162816
      %v337 = vsel %vm335, %v323, 0
      %v340 = vsel %vm335, %v324, 0
      %vm342 = vcmask 1043456
      %v344 = vsel %vm342, %v327, 0
      %346 = vmatprep.subr.mxu0 0.0
      %347 = vmatpush1.msra.mxu0 %v325
      %348 = vmatprep.subr.mxu0 0.0
      %349 = vmatpush1.msra.mxu0 %v326
      %350 = vmatprep.subr.mxu0 0.0
      %351 = vmatpush1.msra.mxu0 %v344
      %352 = vmatprep.subr.mxu0 0.0
      %353 = vmatpush1.msra.mxu0 0.0
      %354 = vmatprep.subr.mxu0 0.0
      %355 = vmatpush1.msra.mxu0 0.0
      %356 = vmatprep.subr.mxu0 0.0
      %357 = vmatpush1.msra.mxu0 0.0
      %358 = vmatprep.subr.mxu0 0.0
      %359 = vmatpush1.msra.mxu0 0.0
      %360 = vmatprep.subr.mxu0 0.0
      %361 = vmatpush1.msra.mxu0 0.0
      %362 = vmatprep.subr.mxu0 0.0
      %363 = vmatpush1.msra.mxu0 0.0
      %364 = vmatprep.subr.mxu0 0.0
      %365 = vmatpush1.msra.mxu0 0.0
      %366 = vmatprep.subr.mxu0 0.0
      %367 = vmatpush1.msra.mxu0 0.0
      %368 = vmatprep.subr.mxu0 0.0
      %369 = vmatpush1.msra.mxu0 0.0
      %370 = vmatprep.subr.mxu0 0.0
      %371 = vmatpush1.msra.mxu0 0.0
      %372 = vmatprep.subr.mxu0 0.0
      %373 = vmatpush1.msra.mxu0 0.0
      %374 = vmatprep.subr.mxu0 0.0
      %375 = vmatpush1.msra.mxu0 0.0
      %376 = vmatprep.subr.mxu0 0.0
      %377 = vmatpush1.msra.mxu0 0.0
      %378 = vmatprep.subr.mxu0 0.0
      %379 = vmatpush1.msra.mxu0 0.0
      %380 = vmatprep.subr.mxu0 0.0
      %381 = vmatpush1.msra.mxu0 0.0
      %382 = vmatprep.subr.mxu0 0.0
      %383 = vmatpush1.msra.mxu0 0.0
      %384 = vmatprep.subr.mxu0 0.0
      %385 = vmatpush1.msra.mxu0 0.0
      %386 = vmatprep.subr.mxu0 0.0
      %387 = vmatpush1.msra.mxu0 0.0
      %388 = vmatprep.subr.mxu0 0.0
      %389 = vmatpush1.msra.mxu0 0.0
      %390 = vmatprep.subr.mxu0 0.0
      %391 = vmatpush1.msra.mxu0 0.0
      %392 = vmatprep.subr.mxu0 0.0
      %393 = vmatpush1.msra.mxu0 0.0
      %394 = vmatprep.subr.mxu0 0.0
      %395 = vmatpush1.msra.mxu0 0.0
      %396 = vmatprep.subr.mxu0 0.0
      %397 = vmatpush1.msra.mxu0 0.0
      %398 = vmatprep.subr.mxu0 0.0
      %399 = vmatpush1.msra.mxu0 0.0
      %400 = vmatprep.subr.mxu0 0.0
      %401 = vmatpush1.msra.mxu0 0.0
      %402 = vmatprep.subr.mxu0 0.0
      %403 = vmatpush1.msra.mxu0 0.0
      %404 = vmatprep.subr.mxu0 0.0
      %405 = vmatpush1.msra.mxu0 0.0
      %406 = vmatprep.subr.mxu0 0.0
      %407 = vmatpush1.msra.mxu0 0.0
      %408 = vmatprep.subr.mxu0 0.0
      %409 = vmatpush1.msra.mxu0 0.0
      %410 = vmatprep.mubr.f32.mxu0 0.0
      %411 = vmatmul.mubr.f32.gmra.mrb[0].mxu0 %v337
      %v412 = vpop.f32.mrb[0].mxu0
      %v413 = vadd.f32 %v333, %v412
      %v414 = vpop.f32.mrb[0].mxu0
      %415 = vmatprep.mubr.f32.mxu0 0.0
      %416 = vmatmul.mubr.f32.gmra.mrb[0].mxu0 %v340
      %v417 = vpop.f32.mrb[0].mxu0
      %v418 = vadd.f32 %v333, %v417
      %v419 = vpop.f32.mrb[0].mxu0
      %420 = vdwg.mxu0
      %v421 = vmax.f32 %v413, 0.0
      %v422 = vmax.f32 %v418, 0.0
      %vm423 = vcmask 261120
      %424 = vst.msk [vmem:[%s302] sm:$0xff] %vm423, %v421
      %425 = vst.msk [vmem:[%s302 + $0x8] sm:$0xff] %vm423, %v422
      %s426 = sld [smem:[#allocation4 + %s312]]
      %v427 = vlaneseq
      %v428 = vand.u32 %v427, 127
      %s429 = smul.u32 %s312, 16
      %v430 = vstv %s429
      %v431 = vadd.s32 %v428, %v430
      %s432 = scalar_lea.vmem %s4, %s426
      %v433 = vld [vmem:[%s432] sm:$0xff]
      %v434 = vld [vmem:[%s432 + $0x8] sm:$0xff]
      %v435 = vld [vmem:[%s432 + $0x10] sm:$0xff]
      %s436 = scalar_lea.vmem %s5, %s426
      %v437 = vld [vmem:[%s436] sm:$0xff]
      %v438 = vld [vmem:[%s436 + $0x8] sm:$0xff]
      %v439 = vld [vmem:[%s436 + $0x10] sm:$0xff]
      %440 = vset.pattern.permute.xlu0 0
      %441 = vperm.xlu0 %440, %v433
      %v442 = vpop.permute.xlu0 %441
      %443 = vset.pattern.permute.xlu0 0
      %444 = vperm.xlu0 %443, %v434
      %v445 = vpop.permute.xlu0 %444
      %446 = vset.pattern.permute.xlu0 0
      %447 = vperm.xlu0 %446, %v435
      %v448 = vpop.permute.xlu0 %447
      %vm449 = vcmp.ge.s32.totalorder %v431, %v442
      %vm450 = vcmp.ge.s32.totalorder %v431, %v445
      %vm451 = vcmp.ge.s32.totalorder %v431, %v448
      %v452 = vadd.s32 %v433, %v437
      %v453 = vadd.s32 %v434, %v438
      %v454 = vadd.s32 %v435, %v439
      %455 = vset.pattern.permute.xlu0 0
      %456 = vperm.xlu0 %455, %v452
      %v457 = vpop.permute.xlu0 %456
      %458 = vset.pattern.permute.xlu0 0
      %459 = vperm.xlu0 %458, %v453
      %v460 = vpop.permute.xlu0 %459
      %461 = vset.pattern.permute.xlu0 0
      %462 = vperm.xlu0 %461, %v454
      %v463 = vpop.permute.xlu0 %462
      %vm464 = vcmp.lt.s32.totalorder %v431, %v457
      %vm465 = vcmp.lt.s32.totalorder %v431, %v460
      %vm466 = vcmp.lt.s32.totalorder %v431, %v463
      %vm467 = vmand %vm449, %vm464
      %vm468 = vmand %vm450, %vm465
      %vm469 = vmand %vm451, %vm466
      %v470 = vsel %vm467, 1, 0
      %v471 = vsel %vm468, 1, 0
      %v472 = vsel %vm469, 1, 0
      %v473 = vcvt.s32.f32 %v470
      %v474 = vcvt.s32.f32 %v471
      %v475 = vcvt.s32.f32 %v472
      %s476 = scalar_lea.vmem [#allocation2], %s426
      %v477 = vld [vmem:[%s476] sm:$0xff]
      %v478 = vld [vmem:[%s476 + $0x8] sm:$0xff]
      %v479 = vld [vmem:[%s476 + $0x10] sm:$0xff]
      %vm480 = vcmask 130048
      %v482 = vsel %vm480, %v473, 0
      %v485 = vsel %vm480, %v474, 0
      %v488 = vsel %vm480, %v475, 0
      %490 = vmatprep.subr.mxu0 0.0
      %491 = vmatpush1.msra.mxu0 %v421
      %492 = vmatprep.subr.mxu0 0.0
      %493 = vmatpush1.msra.mxu0 %v422
      %494 = vmatprep.subr.mxu0 0.0
      %495 = vmatpush1.msra.mxu0 0.0
      %496 = vmatprep.subr.mxu0 0.0
      %497 = vmatpush1.msra.mxu0 0.0
      %498 = vmatprep.subr.mxu0 0.0
      %499 = vmatpush1.msra.mxu0 0.0
      %500 = vmatprep.subr.mxu0 0.0
      %501 = vmatpush1.msra.mxu0 0.0
      %502 = vmatprep.subr.mxu0 0.0
      %503 = vmatpush1.msra.mxu0 0.0
      %504 = vmatprep.subr.mxu0 0.0
      %505 = vmatpush1.msra.mxu0 0.0
      %506 = vmatprep.subr.mxu0 0.0
      %507 = vmatpush1.msra.mxu0 0.0
      %508 = vmatprep.subr.mxu0 0.0
      %509 = vmatpush1.msra.mxu0 0.0
      %510 = vmatprep.subr.mxu0 0.0
      %511 = vmatpush1.msra.mxu0 0.0
      %512 = vmatprep.subr.mxu0 0.0
      %513 = vmatpush1.msra.mxu0 0.0
      %514 = vmatprep.subr.mxu0 0.0
      %515 = vmatpush1.msra.mxu0 0.0
      %516 = vmatprep.subr.mxu0 0.0
      %517 = vmatpush1.msra.mxu0 0.0
      %518 = vmatprep.subr.mxu0 0.0
      %519 = vmatpush1.msra.mxu0 0.0
      %520 = vmatprep.subr.mxu0 0.0
      %521 = vmatpush1.msra.mxu0 0.0
      %522 = vmatprep.subr.mxu0 0.0
      %523 = vmatpush1.msra.mxu0 0.0
      %524 = vmatprep.subr.mxu0 0.0
      %525 = vmatpush1.msra.mxu0 0.0
      %526 = vmatprep.subr.mxu0 0.0
      %527 = vmatpush1.msra.mxu0 0.0
      %528 = vmatprep.subr.mxu0 0.0
      %529 = vmatpush1.msra.mxu0 0.0
      %530 = vmatprep.subr.mxu0 0.0
      %531 = vmatpush1.msra.mxu0 0.0
      %532 = vmatprep.subr.mxu0 0.0
      %533 = vmatpush1.msra.mxu0 0.0
      %534 = vmatprep.subr.mxu0 0.0
      %535 = vmatpush1.msra.mxu0 0.0
      %536 = vmatprep.subr.mxu0 0.0
      %537 = vmatpush1.msra.mxu0 0.0
      %538 = vmatprep.subr.mxu0 0.0
      %539 = vmatpush1.msra.mxu0 0.0
      %540 = vmatprep.subr.mxu0 0.0
      %541 = vmatpush1.msra.mxu0 0.0
      %542 = vmatprep.subr.mxu0 0.0
      %543 = vmatpush1.msra.mxu0 0.0
      %544 = vmatprep.subr.mxu0 0.0
      %545 = vmatpush1.msra.mxu0 0.0
      %546 = vmatprep.subr.mxu0 0.0
      %547 = vmatpush1.msra.mxu0 0.0
      %548 = vmatprep.subr.mxu0 0.0
      %549 = vmatpush1.msra.mxu0 0.0
      %550 = vmatprep.subr.mxu0 0.0
      %551 = vmatpush1.msra.mxu0 0.0
      %552 = vmatprep.subr.mxu0 0.0
      %553 = vmatpush1.msra.mxu0 0.0
      %554 = vmatprep.mubr.f32.mxu0 0.0
      %555 = vmatmul.mubr.f32.gmra.mrb[0].mxu0 %v482
      %v556 = vpop.f32.mrb[0].mxu0
      %v557 = vadd.f32 0.0, %v556
      %v558 = vpop.f32.mrb[0].mxu0
      %559 = vmatprep.mubr.f32.mxu0 0.0
      %560 = vmatmul.mubr.f32.gmra.mrb[0].mxu0 %v485
      %v561 = vpop.f32.mrb[0].mxu0
      %v562 = vadd.f32 0.0, %v561
      %v563 = vpop.f32.mrb[0].mxu0
      %564 = vmatprep.mubr.f32.mxu0 0.0
      %565 = vmatmul.mubr.f32.gmra.mrb[0].mxu0 %v488
      %v566 = vpop.f32.mrb[0].mxu0
      %v567 = vadd.f32 0.0, %v566
      %v568 = vpop.f32.mrb[0].mxu0
      %569 = vdwg.mxu0
      %v570 = vadd.f32 %v477, %v557
      %v571 = vadd.f32 %v478, %v562
      %v572 = vadd.f32 %v479, %v567
      %573 = vst.msk [vmem:[%s476] sm:$0xff] %vm423, %v570
      %574 = vst.msk [vmem:[%s476 + $0x8] sm:$0xff] %vm423, %v571
      %575 = vst.msk [vmem:[%s476 + $0x10] sm:$0xff] %vm423, %v572
      %p576 = scmp.eq.s32.totalorder %s30, 2
      // Predicated region
      $region45: #{tpu_custom_call.1} parent=39 // pred_check
        %p577 = pneg %p576
      $region46: #{tpu_custom_call.1} parent=39 // pred_check_branch
        %579 = sbr.rel (%p577) target = $region48
      $region47: #{tpu_custom_call.1} parent=39 // pred_region
        %v580 = vld [vmem:[#allocation2] sm:$0xff]
        %v581 = vld [vmem:[#allocation2 + $0x8] sm:$0xff]
        %v582 = vld [vmem:[#allocation2 + $0x10] sm:$0xff]
        %v583 = vld [vmem:[#allocation2 + $0x18] sm:$0xff]
        %v584 = vld [vmem:[#allocation2 + $0x20] sm:$0xff]
        %585 = vst.msk [vmem:[%s310] sm:$0xff] %vm423, %v580
        %586 = vst.msk [vmem:[%s310 + $0x8] sm:$0xff] %vm423, %v581
        %587 = vst.msk [vmem:[%s310 + $0x10] sm:$0xff] %vm423, %v582
        %588 = vst.msk [vmem:[%s310 + $0x18] sm:$0xff] %vm423, %v583
        %589 = vst.msk [vmem:[%s310 + $0x20] sm:$0xff] %vm423, %v584
      $region48: #{tpu_custom_call.1} parent=39 // pred_fallthru
        _
      %s590 = smul.u32 %s29, 3
      %s591 = sadd.s32 %s590, %s30
      %s592 = smul.u32 2, %s591
      %p593 = scmp.lt.s32.totalorder %s592, 11
      %s594 = scalar_select %p593, %s592, 11
      %s595 = smul.addr %s594, 8
      %s596 = scalar_lea.vmem %s6, %s595
      %p597 = scmp.lt.s32.totalorder %s29, 1
      %s598 = scalar_select %p597, %s29, 1
      %s599 = smul.addr %s598, 5
      %s600 = smul.addr %s599, 8
      %s601 = scalar_lea.vmem %s7, %s600
      // Predicated region
      $region49: #{tpu_custom_call.1} parent=39 // pred_check
        %p602 = pneg %p173
      $region50: #{tpu_custom_call.1} parent=39 // pred_check_branch
        %604 = sbr.rel (%p602) target = $region52
      $region51: #{tpu_custom_call.1} parent=39 // pred_region
        %s605 = smul.u32 %s29, 3
        %s606 = sadd.s32 %s605, %s30
        %s607 = smul.u32 2, %s606
      $region52: #{tpu_custom_call.1} parent=39 // pred_fallthru
        _
      // Predicated region
      $region53: #{tpu_custom_call.1} parent=39 // pred_check
        %p608 = pneg %p199
      $region54: #{tpu_custom_call.1} parent=39 // pred_check_branch
        %610 = sbr.rel (%p608) target = $region56
      $region55: #{tpu_custom_call.1} parent=39 // pred_region
        _
      $region56: #{tpu_custom_call.1} parent=39 // pred_fallthru
        _
    $region40: #{tpu_custom_call.1} parent=5 // pred_fallthru
      _
    %p611 = scmp.le.s32.totalorder 2, %s20
    // Predicated region
    $region57: #{tpu_custom_call.1} parent=5 // pred_check
      %p612 = pneg %p611
    $region58: #{tpu_custom_call.1} parent=5 // pred_check_branch
      %614 = sbr.rel (%p612) target = $region60
    $region59: #{tpu_custom_call.1} parent=5 // pred_region
      %s615 = ssub.s32 %s20, 2
      // Predicated region
      $region61: #{tpu_custom_call.1} parent=59 // pred_check
        %p616 = pneg %p179
      $region62: #{tpu_custom_call.1} parent=59 // pred_check_branch
        %618 = sbr.rel (%p616) target = $region64
      $region63: #{tpu_custom_call.1} parent=59 // pred_region
        %s619 = smul.u32 %s31, 3
        %s620 = sadd.s32 %s619, %s32
        %s621 = smul.u32 2, %s620
        %p622 = scmp.lt.s32.totalorder %s621, 11
        %s623 = scalar_select %p622, %s621, 11
        %s624 = smul.addr %s623, 8
        %s625 = scalar_lea.vmem %s6, %s624
      $region64: #{tpu_custom_call.1} parent=59 // pred_fallthru
        _
      // Predicated region
      $region65: #{tpu_custom_call.1} parent=59 // pred_check
        %p626 = pneg %p205
      $region66: #{tpu_custom_call.1} parent=59 // pred_check_branch
        %628 = sbr.rel (%p626) target = $region68
      $region67: #{tpu_custom_call.1} parent=59 // pred_region
        %p629 = scmp.lt.s32.totalorder %s31, 1
        %s630 = scalar_select %p629, %s31, 1
        %s631 = smul.addr %s630, 5
        %s632 = smul.addr %s631, 8
        %s633 = scalar_lea.vmem %s7, %s632
      $region68: #{tpu_custom_call.1} parent=59 // pred_fallthru
        _
    $region60: #{tpu_custom_call.1} parent=5 // pred_fallthru
      _
  $region6: #{tpu_custom_call.1} parent=0 // loop_footer
    %s24 = sadd.s32 1, %s20
  $region7: #{tpu_custom_call.1} parent=0 // loop_footer_branch
    %19 = sbr.rel target = $region3
  $region8: #{tpu_custom_call.1} parent=0 // loop_exit
    _

</llo_original>
